<compile_context>
chip_gen: v5e
topology: v5e:2x2
jax: 0.10.0
libtpu: 0.0.40
codegen_flags: <defaults>
</compile_context>

<pallas_src>
import functools

import jax
import jax.numpy as jnp
from jax.experimental import pallas as pl
from jax.experimental.pallas import tpu as pltpu

_MIB = 1024 * 1024


def _rmsnorm_kernel(x_ref, w_ref, o_ref, *, eps):
    # x_ref: (tile_rows, D)   w_ref: (1, D)   o_ref: (tile_rows, D)
    x = x_ref[...].astype(jnp.float32)
    w = w_ref[...].astype(jnp.float32)            # D elems, once per block -> negligible
    # rms = sqrt(sum(x^2, -1) + eps); use rsqrt (EUP) + multiplies, no VPU divide.
    sumsq = jnp.sum(x * x, axis=-1, keepdims=True)
    inv = jax.lax.rsqrt(sumsq + eps)
    o_ref[...] = ((x * inv) * w).astype(o_ref.dtype)


def _sublane_packing(dtype) -> int:
    # 32-bit: 8 rows/vreg, 16-bit: 16, 8-bit: 32.
    itemsize = jnp.dtype(dtype).itemsize
    return max(8, 32 // max(1, itemsize))


def _choose_tile_rows(rows, d_model, dtype, target_block_bytes):
    """Row tile giving ~target_block_bytes of x-dtype per block, aligned to the dtype's
    sublane packing and clamped to the (sublane-rounded) row count."""
    packing = _sublane_packing(dtype)
    row_bytes = max(1, d_model * jnp.dtype(dtype).itemsize)
    tr = max(packing, target_block_bytes // row_bytes)
    tr = (tr // packing) * packing
    rows_rounded = pl.cdiv(rows, packing) * packing
    tr = min(tr, rows_rounded)
    return max(tr, packing)


def _device_kind() -> str:
    try:
        return jax.devices()[0].device_kind.lower()
    except Exception:
        return ""


def _is_v7x() -> bool:
    # v7x device kinds contain "7"; v2..v6 do not.
    return "7" in _device_kind()


def _vmem_limit_bytes() -> int:
    cap = None
    try:
        cap = pltpu.get_tpu_info().vmem_capacity_bytes
    except Exception:
        cap = None
    if not cap:
        cap = 64 * _MIB if _is_v7x() else 128 * _MIB   # v7x: 64 MiB/TC, v5e/v6e: 128 MiB
    # Leave ~25% headroom for the compiler; never request more than 64 MiB.
    return int(min(64 * _MIB, (3 * cap) // 4))


def rmsnorm_pallas(x, weight, eps=1e-6, tile_rows=None, target_block_bytes=2 * _MIB):
    """x: (..., d_model), weight: (d_model,). Returns same shape/dtype as x.

    Ragged row counts are handled by Pallas boundary-block masking: rows are independent,
    so the unspecified padded rows of the last block never touch valid outputs.
    d_model that is a multiple of 128 gets unmasked lane-dense stores (fastest path).
    """
    orig_shape = x.shape
    d_model = orig_shape[-1]
    x2d = x.reshape(-1, d_model)
    rows = x2d.shape[0]

    if tile_rows is None:
        tile_rows = _choose_tile_rows(rows, d_model, x.dtype, target_block_bytes)

    grid = (pl.cdiv(rows, tile_rows),)          # no pre-padding; last block is masked
    w2d = weight.reshape(1, d_model)
    kernel = functools.partial(_rmsnorm_kernel, eps=float(eps))
    vmem_limit = _vmem_limit_bytes()

    def _run(dim_sem):
        return pl.pallas_call(
            kernel,
            out_shape=jax.ShapeDtypeStruct((rows, d_model), x.dtype),
            grid_spec=pltpu.PrefetchScalarGridSpec(
                num_scalar_prefetch=0,
                grid=grid,
                in_specs=[
                    pl.BlockSpec((tile_rows, d_model), lambda i: (i, 0)),
                    pl.BlockSpec((1, d_model), lambda i: (0, 0)),   # weight resident
                ],
                out_specs=pl.BlockSpec((tile_rows, d_model), lambda i: (i, 0)),
            ),
            compiler_params=pltpu.CompilerParams(
                dimension_semantics=dim_sem,
                vmem_limit_bytes=vmem_limit,
            ),
        )(x2d, w2d)

    if _is_v7x() and hasattr(pltpu, "CORE_PARALLEL"):
        # Shard the row grid across both v7x TensorCores; fall back if rejected.
        try:
            out = _run((pltpu.CORE_PARALLEL,))
        except Exception:
            out = _run(("parallel",))
    else:
        out = _run(("parallel",))

    return out.reshape(orig_shape)


def rmsnorm_ref(x, weight, eps=1e-6):
    # Pure-JAX reference mirroring the PyTorch module exactly (no /d_model).
    xf = x.astype(jnp.float32)
    norm = jnp.sqrt(jnp.sum(xf ** 2, axis=-1, keepdims=True))
    rms = jnp.sqrt(jnp.mean(norm ** 2, axis=-1, keepdims=True) + eps)
    return (weight.astype(jnp.float32) * xf / rms).astype(x.dtype)


if __name__ == "__main__":
    key = jax.random.PRNGKey(0)
    k1, k2, k3, k4 = jax.random.split(key, 4)

    # Test 1: lane-aligned feature dim, row count fits a single block.
    batch, seq, d_model = 2, 8, 128
    x = jax.random.normal(k1, (batch, seq, d_model), dtype=jnp.float32)
    weight = jnp.ones((d_model,), dtype=jnp.float32)     # matches nn.Parameter(torch.ones(d_model))
    out = rmsnorm_pallas(x, weight, eps=1e-6)
    jax.block_until_ready(out)
    assert out.shape == x.shape
    assert jnp.allclose(out, rmsnorm_ref(x, weight), atol=1e-5, rtol=1e-5), "mismatch (aligned)"

    # Test 2: row count not divisible by sublane packing (ragged boundary block, no pre-pad).
    x2 = jax.random.normal(k2, (3, 5, d_model), dtype=jnp.float32)
    out2 = rmsnorm_pallas(x2, weight, eps=1e-6)
    jax.block_until_ready(out2)
    assert out2.shape == x2.shape
    assert jnp.allclose(out2, rmsnorm_ref(x2, weight), atol=1e-5, rtol=1e-5), "mismatch (ragged)"

    # Test 3: bf16, non-trivial weight, multi-block grid with a partial last block.
    d3 = 256
    x3 = jax.random.normal(k3, (40, d3), dtype=jnp.bfloat16)
    w3 = (1.0 + 0.1 * jax.random.normal(k4, (d3,))).astype(jnp.bfloat16)
    out3 = rmsnorm_pallas(x3, w3, eps=1e-6, tile_rows=16)   # grid = cdiv(40,16) = 3
    jax.block_until_ready(out3)
    assert out3.shape == x3.shape
    assert jnp.allclose(out3.astype(jnp.float32),
                        rmsnorm_ref(x3, w3).astype(jnp.float32),
                        atol=2e-2, rtol=2e-2), "mismatch (bf16 multi-block)"

    print("KERNEL_OK")
</pallas_src>

<mosaic_0001>
module attributes {stable_mosaic.version = 11 : i64} {
  func.func @_rmsnorm_kernel(%arg0: i32, %arg1: memref<16x128xf32, #tpu.memory_space<vmem>>, %arg2: memref<1x128xf32, #tpu.memory_space<vmem>>, %arg3: memref<16x128xf32, #tpu.memory_space<vmem>>) attributes {dimension_semantics = [#tpu.dimension_semantics<parallel>], iteration_bounds = array<i64: 1>, scalar_prefetch = 0 : i64, scratch_operands = 0 : i64, tpu.core_type = #tpu.core_type<tc>, window_params = [{transform_indices = @transform_0, window_bounds = array<i64: 16, 128>}, {pipeline_mode = #tpu.pipeline_mode<synchronous>, transform_indices = @transform_1, window_bounds = array<i64: 1, 128>}, {transform_indices = @transform_2, window_bounds = array<i64: 16, 128>}]} {
    %c0 = arith.constant 0 : index
    %c0_0 = arith.constant 0 : index
    %0 = vector.load %arg1[%c0, %c0_0] : memref<16x128xf32, #tpu.memory_space<vmem>>, vector<16x128xf32>
    %c0_1 = arith.constant 0 : index
    %c0_2 = arith.constant 0 : index
    %1 = vector.load %arg2[%c0_1, %c0_2] : memref<1x128xf32, #tpu.memory_space<vmem>>, vector<1x128xf32>
    %2 = arith.mulf %0, %0 : vector<16x128xf32>
    %cst = arith.constant dense<0.000000e+00> : vector<16xf32>
    %3 = vector.multi_reduction <add>, %2, %cst [1] : vector<16x128xf32> to vector<16xf32>
    %4 = vector.shape_cast %3 : vector<16xf32> to vector<16x1xf32>
    %cst_3 = arith.constant 9.99999997E-7 : f32
    %5 = vector.broadcast %cst_3 : f32 to vector<16x1xf32>
    %6 = arith.addf %4, %5 : vector<16x1xf32>
    %7 = math.rsqrt %6 : vector<16x1xf32>
    %8 = vector.broadcast %7 : vector<16x1xf32> to vector<16x128xf32>
    %9 = arith.mulf %0, %8 : vector<16x128xf32>
    %10 = vector.broadcast %1 : vector<1x128xf32> to vector<16x128xf32>
    %11 = arith.mulf %9, %10 : vector<16x128xf32>
    %c0_4 = arith.constant 0 : index
    %c0_5 = arith.constant 0 : index
    %12 = vector.load %arg3[%c0_4, %c0_5] : memref<16x128xf32, #tpu.memory_space<vmem>>, vector<16x128xf32>
    tpu.vector_store %arg3[%c0_4, %c0_5], %11 {strides = array<i32>} : memref<16x128xf32, #tpu.memory_space<vmem>>, vector<16x128xf32>,
    return
  }
  func.func @transform_0(%arg0: i32) -> (i32, i32) {
    %c0_i32 = arith.constant 0 : i32
    %c0_i32_0 = arith.constant 0 : i32
    return %arg0, %c0_i32 : i32, i32
  }
  func.func @transform_1(%arg0: i32) -> (i32, i32) {
    %c0_i32 = arith.constant 0 : i32
    %c0_i32_0 = arith.constant 0 : i32
    %c0_i32_1 = arith.constant 0 : i32
    return %c0_i32, %c0_i32_0 : i32, i32
  }
  func.func @transform_2(%arg0: i32) -> (i32, i32) {
    %c0_i32 = arith.constant 0 : i32
    %c0_i32_0 = arith.constant 0 : i32
    return %arg0, %c0_i32 : i32, i32
  }
}

</mosaic_0001>

<llo_original>
// kernel: tpu_custom_call.1
$region0: #{tpu_custom_call.1}
  #allocation0 [shape = 'u32[]', space=smem, size = 0x4, offset = 0x4, fixed_abs, tag = 'smem constant byte address 0x4 - core index']
  #allocation1 [shape = 'u32[72,128]{1,0:T(1,128)}', space=vmem, size = 0x9000, scoped, tag = 'internal scratch']
  %s0 = inlined_call_operand.hbm [shape: f32[16,128], index: 0, kind: input, shape index: {}]
  %s1 = inlined_call_operand.hbm [shape: f32[1,128], index: 1, kind: input, shape index: {}]
  %s2 = inlined_call_operand.hbm [shape: f32[16,128], index: 2, kind: output, shape index: {}]
  %s3 = sld [smem:[#allocation0]]
  $region26: #{tpu_custom_call.1} parent=0
    _
  %s5 = ssub.s32 1, %s3
  %s6 = scalar_select 0, %s5, %s3
  $region1: #{tpu_custom_call.1} parent=0
    #allocation2 [shape = 'u8[8192]{0}', space=vmem, size = 0x2000, scoped, tag = 'input window, operand 0, single buffered']
    #allocation3 [shape = 's32[1]{0}', space=sflag, size = 0x4, scoped, tag = 'scoped memory for tpu_custom_call.1']
    #allocation4 [shape = 's32[1]{0}', space=sflag, size = 0x4, scoped, tag = 'scoped memory for tpu_custom_call.1']
    #allocation5 [shape = 'u8[512]{0}', space=vmem, size = 0x400, scoped, tag = 'input window, operand 1, single buffered']
    #allocation6 [shape = 's32[1]{0}', space=sflag, size = 0x4, scoped, tag = 'scoped memory for tpu_custom_call.1']
    #allocation7 [shape = 'u8[8192]{0}', space=vmem, size = 0x2000, scoped, tag = 'output window, operand 0, single buffered']
    %7 = vsyncpa [#allocation3], 0
    %8 = vsyncpa [#allocation6], 0
    %9 = vsyncpa [#allocation4], 0
    // Predicated region
    $region2: #{tpu_custom_call.1} parent=1 // pred_check
      _
    $region3: #{tpu_custom_call.1} parent=1 // pred_check_branch
      %11 = sbr.rel (0) target = $region5
    $region4: #{tpu_custom_call.1} parent=1 // pred_region
      %13 = vsyncadd [#allocation3], 0
      %s14 = sshll.u32 %s0, 4
      %s15 = int_to_ptr.hbm [resolvable:$true] %s14
      %s16 = sshll.u32 [#allocation2], 4
      %s17 = int_to_ptr.vmem [resolvable:$true] %s16
      %22 = dma.hbm_to_vmem [thread:$0]  %s15, 256, %s17, [#allocation3], 128, 128, 8
    $region5: #{tpu_custom_call.1} parent=1 // pred_fallthru
      _
    // Predicated region
    $region6: #{tpu_custom_call.1} parent=1 // pred_check
      _
    $region7: #{tpu_custom_call.1} parent=1 // pred_check_branch
      %24 = sbr.rel (0) target = $region9
    $region8: #{tpu_custom_call.1} parent=1 // pred_region
      %26 = vsyncadd [#allocation6], 0
      %s28 = sshll.u32 %s1, 4
      %s29 = int_to_ptr.hbm [resolvable:$true] %s28
      %s30 = sshll.u32 [#allocation5], 4
      %s31 = int_to_ptr.vmem [resolvable:$true] %s30
      %33 = dma.hbm_to_vmem [thread:$0]  %s29, 16, %s31, [#allocation6]
    $region9: #{tpu_custom_call.1} parent=1 // pred_fallthru
      _
    // Predicated region
    $region10: #{tpu_custom_call.1} parent=1 // pred_check
      _
    $region11: #{tpu_custom_call.1} parent=1 // pred_check_branch
      %35 = sbr.rel (0) target = $region13
    $region12: #{tpu_custom_call.1} parent=1 // pred_region
      %37 = dma.done [#allocation3], 256
    $region13: #{tpu_custom_call.1} parent=1 // pred_fallthru
      _
    // Predicated region
    $region14: #{tpu_custom_call.1} parent=1 // pred_check
      _
    $region15: #{tpu_custom_call.1} parent=1 // pred_check_branch
      %39 = sbr.rel (0) target = $region17
    $region16: #{tpu_custom_call.1} parent=1 // pred_region
      %41 = dma.done [#allocation6], 16
    $region17: #{tpu_custom_call.1} parent=1 // pred_fallthru
      _
    %v42 = vld [vmem:[#allocation2] sm:$0xff]
    %v43 = vld [vmem:[#allocation2 + $0x8] sm:$0xff]
    %v44 = vld [vmem:[#allocation5] sm:$0x1]
    %v45 = vmul.f32 %v42, %v42
    %v46 = vmul.f32 %v43, %v43
    %47 = vadd.xlane.f32.xlu0 %v45
    %v48 = vpop.xlane.xlu0 %47
    %49 = vadd.xlane.f32.xlu0 %v46
    %v50 = vpop.xlane.xlu0 %49
    %v51 = vadd.f32 %v48, 1e-06
    %v52 = vadd.f32 %v50, 1e-06
    %v53 = vrsqrt.pop %v51
    %v54 = vmul.f32 %v53, %v51
    %v55 = vmul.f32 %v54, %v53
    %v56 = vmul.f32 0.5, %v55
    %v57 = vsub.f32 1.5, %v56
    %v58 = vmul.f32 %v53, %v57
    %vm59 = vweird.f32 %v51
    %vm60 = vweird.f32 %v53
    %vm61 = vmor %vm59, %vm60
    %v62 = vsel %vm61, %v53, %v58
    %v63 = vrsqrt.pop %v52
    %v64 = vmul.f32 %v63, %v52
    %v65 = vmul.f32 %v64, %v63
    %v66 = vmul.f32 0.5, %v65
    %v67 = vsub.f32 1.5, %v66
    %v68 = vmul.f32 %v63, %v67
    %vm69 = vweird.f32 %v52
    %vm70 = vweird.f32 %v63
    %vm71 = vmor %vm69, %vm70
    %v72 = vsel %vm71, %v63, %v68
    %v73 = vmul.f32 %v42, %v62
    %v74 = vmul.f32 %v43, %v72
    %v76 = vperm.slane %v44, 0
    %v78 = vmul.f32 %v73, %v76
    %v79 = vmul.f32 %v74, %v76
    %80 = vst [vmem:[#allocation7] sm:$0xff] %v78
    %81 = vst [vmem:[#allocation7 + $0x8] sm:$0xff] %v79
    // Predicated region
    $region18: #{tpu_custom_call.1} parent=1 // pred_check
      _
    $region19: #{tpu_custom_call.1} parent=1 // pred_check_branch
      %83 = sbr.rel (0) target = $region21
    $region20: #{tpu_custom_call.1} parent=1 // pred_region
      %85 = vsyncadd [#allocation4], 0
      %s86 = sshll.u32 [#allocation7], 4
      %s87 = int_to_ptr.vmem [resolvable:$true] %s86
      %s88 = sshll.u32 %s2, 4
      %s89 = int_to_ptr.hbm [resolvable:$true] %s88
      %94 = dma.vmem_to_hbm [thread:$0]  %s87, 256, %s89, [#allocation4], 128, 128, 8
    $region21: #{tpu_custom_call.1} parent=1 // pred_fallthru
      _
    // Predicated region
    $region22: #{tpu_custom_call.1} parent=1 // pred_check
      _
    $region23: #{tpu_custom_call.1} parent=1 // pred_check_branch
      %96 = sbr.rel (0) target = $region25
    $region24: #{tpu_custom_call.1} parent=1 // pred_region
      %98 = dma.done [#allocation4], 256
    $region25: #{tpu_custom_call.1} parent=1 // pred_fallthru
      _
    %99 = vsyncpa [#allocation3], 1
    %100 = vsyncpa [#allocation6], 1
    %101 = vsyncpa [#allocation4], 1

</llo_original>
